<compile_context>
chip_gen: v7x
topology: tpu7x:2x2x1
jax: 0.10.0
libtpu: 0.0.40
codegen_flags: <defaults>
</compile_context>

<pallas_src>
import functools

import jax
import jax.numpy as jnp
from jax import lax
from jax.experimental import pallas as pl
from jax.experimental.pallas import tpu as pltpu

EPS = 1e-6
NEG_INF = -1e30          # applied to f32 scores only (bf16 shares the f32 exponent range)


# ----------------------------- small helpers (f32 math) -----------------------------
def _rmsnorm(x, w):
    ms = jnp.mean(x * x, axis=-1, keepdims=True)
    return x * lax.rsqrt(ms + EPS) * w


def _silu(x):
    return x * jax.nn.sigmoid(x)


# ------------------------------- device configuration --------------------------------
@functools.lru_cache(maxsize=1)
def _device_kind():
    try:
        return jax.devices()[0].device_kind.lower()
    except Exception:
        return ""


def _device_config():
    kind = _device_kind()
    if "v5" in kind or "v6" in kind:   # 128 MiB VMEM parts: bigger tiles, higher limit
        return dict(vmem=100 * 1024 * 1024, tq=512, th=1024,
                    exp_dtype=jnp.float32 if "v5" in kind else jnp.bfloat16)
    # v7x (64 MiB VMEM) / unknown: conservative budget, bf16 EUP assumed
    return dict(vmem=48 * 1024 * 1024, tq=256, th=512, exp_dtype=jnp.bfloat16)


# ------------------ single-buffering capability probe (pl.Buffered(1)) ---------------
@functools.lru_cache(maxsize=1)
def _single_buffer_supported():
    """Probe pl.Buffered(1) support, including a changing block index (K/V per-batch case)."""
    try:
        def _k(x_ref, o_ref):
            o_ref[...] = x_ref[...] + 1.0

        out = pl.pallas_call(
            _k, grid=(2,),
            in_specs=[pl.BlockSpec((8, 128), lambda i: (i, 0),
                                   pipeline_mode=pl.Buffered(1))],
            out_specs=pl.BlockSpec((8, 128), lambda i: (i, 0)),
            out_shape=jax.ShapeDtypeStruct((16, 128), jnp.float32),
        )(jnp.zeros((16, 128), jnp.float32))
        jax.block_until_ready(out)
        return True
    except Exception:
        return False


def _spec(shape, index_map, single_buffer=False):
    """BlockSpec; constant / per-batch inputs get single buffering when supported."""
    if single_buffer and _single_buffer_supported():
        return pl.BlockSpec(shape, index_map, pipeline_mode=pl.Buffered(1))
    return pl.BlockSpec(shape, index_map)


# ------------------------------ tile fitting under VMEM ------------------------------
def _largest_divisor_leq(n, target):
    t = max(1, min(int(target), n))
    while n % t:
        t -= 1
    return t


def _fit_tiles(D, Lk, Hd, Lq, tq, th, budget, single_buf):
    """Pick TQ / TH that divide Lq / Hd and keep the estimated VMEM footprint under budget."""
    TQ = _largest_divisor_leq(Lq, tq)
    TH = _largest_divisor_leq(Hd, th)
    bw = 1 if single_buf else 2

    def est(tq_, th_):
        return (2 * D * D * 2 * bw              # wq + wo (bf16)
                + 2 * Lk * D * 2 * bw           # K + V (bf16, per-batch blocks)
                + (8 * D + Lk) * 4 * bw         # adaLN vector, norm weights, key mask (f32)
                + 2 * tq_ * D * 2 * 2           # seq_q in + out tiles (double-buffered)
                + 3 * D * th_ * 2 * 2           # fused w_in + w_out tiles (double-buffered)
                + tq_ * D * 14)                 # q/o/y/h/acc scratch

    while est(TQ, TH) > budget and TH > 128:
        new_th = _largest_divisor_leq(Hd, TH // 2)
        if new_th == TH:
            break
        TH = new_th
    while est(TQ, TH) > budget and TQ > 128:
        new_tq = _largest_divisor_leq(Lq, TQ // 2)
        if new_tq == TQ:
            break
        TQ = new_tq
    return TQ, TH


# -------------------------- K/V projection kernel (per batch) -------------------------
def kv_proj_kernel(seq_k_ref, nkw_ref, wkv_ref, k_out_ref, v_out_ref):
    D = seq_k_ref.shape[-1]
    xk = _rmsnorm(seq_k_ref[0].astype(jnp.float32), nkw_ref[...]).astype(jnp.bfloat16)
    kv = jnp.dot(xk, wkv_ref[...], preferred_element_type=jnp.float32)   # (TK, 2D)
    k_out_ref[0] = kv[:, :D].astype(k_out_ref.dtype)
    v_out_ref[0] = kv[:, D:].astype(v_out_ref.dtype)


# ------------------------------ fused CALayer kernel ---------------------------------
def ca_layer_kernel(seq_q_ref, k_ref, v_ref, ada_ref, mask_ref,
                    n1w_ref, n2w_ref, wq_ref, wo_ref, win_ref, wout_ref,
                    out_ref,
                    q_sc, o_sc, y_sc, h_sc, acc_sc, *, num_heads, exp_dtype):
    D = seq_q_ref.shape[-1]
    dh = D // num_heads
    TH = wout_ref.shape[0]
    h_idx = pl.program_id(2)

    # ---------- attention block + MLP-input prep: once per (b, q) tile (h == 0) ------
    @pl.when(h_idx == 0)
    def _attention():
        x = seq_q_ref[0].astype(jnp.float32)              # (TQ, D) f32
        ada = ada_ref[0]                                  # (1, 6D) f32
        shift_msa = ada[:, 0 * D:1 * D]
        scale_msa = ada[:, 1 * D:2 * D]
        gate_msa = ada[:, 2 * D:3 * D]
        shift_mlp = ada[:, 3 * D:4 * D]
        scale_mlp = ada[:, 4 * D:5 * D]

        # elementwise prologue in f32 (safe on v5e); cast only at matmul inputs
        xq = (_rmsnorm(x, n1w_ref[...]) * (1.0 + scale_msa) + shift_msa).astype(jnp.bfloat16)
        sm_scale = 1.0 / (dh ** 0.5)
        q_sc[...] = (jnp.dot(xq, wq_ref[...], preferred_element_type=jnp.float32)
                     * sm_scale).astype(jnp.bfloat16)     # softmax scale folded once

        valid = mask_ref[0] > 0.5                         # (1, Lk), hoisted out of head loop

        def head_body(h, carry):
            lo = pl.multiple_of(h * dh, dh)
            qh = q_sc[:, pl.ds(lo, dh)]                   # (TQ, dh) bf16 (ref slice)
            kh = k_ref[:, pl.ds(lo, dh)]                  # (Lk, dh) bf16
            vh = v_ref[:, pl.ds(lo, dh)]                  # (Lk, dh) bf16
            s = lax.dot_general(qh, kh, (((1,), (1,)), ((), ())),
                                preferred_element_type=jnp.float32)   # (TQ, Lk) f32
            s = jnp.where(valid, s, NEG_INF)
            m = jnp.max(s, axis=-1, keepdims=True)                     # f32 statistics
            p = jnp.exp((s - m).astype(exp_dtype)).astype(jnp.bfloat16)
            denom = jnp.sum(p.astype(jnp.float32), axis=-1, keepdims=True)
            r = pl.reciprocal(denom, approx=True)                      # (TQ, 1) f32
            oh = jnp.dot(p, vh, preferred_element_type=jnp.float32) * r
            o_sc[:, pl.ds(lo, dh)] = oh.astype(o_sc.dtype)
            return carry

        lax.fori_loop(0, num_heads, head_body, 0)

        o = jnp.dot(o_sc[...], wo_ref[...], preferred_element_type=jnp.float32)
        y = x + gate_msa * o                              # attention residual (f32)
        y_sc[...] = y
        h_sc[...] = (_rmsnorm(y, n2w_ref[...]) * (1.0 + scale_mlp)
                     + shift_mlp).astype(jnp.bfloat16)
        acc_sc[...] = jnp.zeros_like(acc_sc)

    # ---------------- gated-GLU MLP, tiled over the hidden dimension -----------------
    hm = h_sc[...]                                                        # (TQ, D) bf16
    u = jnp.dot(hm, win_ref[...], preferred_element_type=jnp.float32)     # (TQ, 2*TH)
    g = (_silu(u[:, :TH]) * u[:, TH:]).astype(jnp.bfloat16)
    acc_sc[...] += jnp.dot(g, wout_ref[...], preferred_element_type=jnp.float32)

    @pl.when(h_idx == pl.num_programs(2) - 1)
    def _finalize():
        gate_mlp = ada_ref[0][:, 5 * D:6 * D]
        out_ref[0] = (y_sc[...] + gate_mlp * acc_sc[...]).astype(out_ref.dtype)


# ---------------------------------- wrapper -------------------------------------------
def ca_layer_forward(params, seq_q, seq_k, ctxt, mask_k, *, tq=None, th=None):
    """seq_q: (B, Lq, D) bf16, seq_k: (B, Lk, D) bf16, ctxt: (B, 3D) f32, mask_k: (B, Lk) bool."""
    B, Lq, D = seq_q.shape
    Lk = seq_k.shape[1]
    num_heads = int(params["num_heads"])
    Hd = params["w_out"].shape[0]
    assert D % num_heads == 0, "hidden_dim must be divisible by num_heads"

    cfg = _device_config()
    budget = cfg["vmem"]
    single_buf = _single_buffer_supported()
    TQ, TH = _fit_tiles(D, Lk, Hd, Lq,
                        tq if tq is not None else cfg["tq"],
                        th if th is not None else cfg["th"],
                        budget, single_buf)
    n_q = Lq // TQ
    n_h = Hd // TH
    TK = _largest_divisor_leq(Lk, 512)
    n_k = Lk // TK

    # 1) adaLN modulation: M=B matmul (pure weight streaming) -> plain XLA, f32 accumulate.
    hctx = _silu(ctxt.astype(jnp.float32)).astype(params["w_ada"].dtype)
    ada = (jnp.dot(hctx, params["w_ada"], preferred_element_type=jnp.float32)
           + params["b_ada"].astype(jnp.float32))
    ada3 = ada.reshape(B, 1, 6 * D)
    mask3 = mask_k.astype(jnp.float32).reshape(B, 1, Lk)

    # 2) K/V projection once per batch (fused wkv matmul) — removes the per-query-tile
    #    recomputation and drops wk/wv out of the main kernel's VMEM.
    wkv = jnp.concatenate([params["wk"], params["wv"]], axis=1)          # (D, 2D) bf16
    k_all, v_all = pl.pallas_call(
        kv_proj_kernel,
        grid=(B, n_k),
        in_specs=[
            pl.BlockSpec((1, TK, D), lambda b, i: (b, i, 0)),
            _spec((1, D), lambda b, i: (0, 0), single_buffer=True),
            _spec((D, 2 * D), lambda b, i: (0, 0), single_buffer=True),
        ],
        out_specs=[pl.BlockSpec((1, TK, D), lambda b, i: (b, i, 0)),
                   pl.BlockSpec((1, TK, D), lambda b, i: (b, i, 0))],
        out_shape=(jax.ShapeDtypeStruct((B, Lk, D), jnp.bfloat16),
                   jax.ShapeDtypeStruct((B, Lk, D), jnp.bfloat16)),
        compiler_params=pltpu.CompilerParams(
            dimension_semantics=("parallel", "parallel"),
            vmem_limit_bytes=budget),
    )(seq_k, params["normk_w"], wkv)

    # 3) Fused GLU in-projection: per hidden tile, columns [x1_tile | x2_tile] contiguous
    #    so one (TQ, D) @ (D, 2*TH) matmul produces both halves.
    w1 = params["w_in"][:, :Hd]
    w2 = params["w_in"][:, Hd:]
    w_in_f = jnp.concatenate([w1.reshape(D, n_h, TH), w2.reshape(D, n_h, TH)],
                             axis=-1).reshape(D, n_h * 2 * TH)

    const = lambda shape: _spec(shape, lambda b, q, h: (0,) * len(shape), single_buffer=True)

    out = pl.pallas_call(
        functools.partial(ca_layer_kernel, num_heads=num_heads, exp_dtype=cfg["exp_dtype"]),
        grid=(B, n_q, n_h),
        in_specs=[
            pl.BlockSpec((1, TQ, D), lambda b, q, h: (b, q, 0)),          # seq_q tile
            _spec((None, Lk, D), lambda b, q, h: (b, 0, 0), True),        # K (per batch)
            _spec((None, Lk, D), lambda b, q, h: (b, 0, 0), True),        # V (per batch)
            _spec((1, 1, 6 * D), lambda b, q, h: (b, 0, 0), True),        # adaLN vector (f32)
            _spec((1, 1, Lk), lambda b, q, h: (b, 0, 0), True),           # key mask (f32)
            const((1, D)), const((1, D)),                                 # norm1 / norm2
            const((D, D)), const((D, D)),                                 # wq / wo
            pl.BlockSpec((D, 2 * TH), lambda b, q, h: (0, h)),            # fused w_in tile
            pl.BlockSpec((TH, D), lambda b, q, h: (h, 0)),                # w_out tile
        ],
        out_specs=pl.BlockSpec((1, TQ, D), lambda b, q, h: (b, q, 0)),
        out_shape=jax.ShapeDtypeStruct((B, Lq, D), seq_q.dtype),
        scratch_shapes=[
            pltpu.VMEM((TQ, D), jnp.bfloat16),  # q_sc : projected queries (head slicing)
            pltpu.VMEM((TQ, D), jnp.bfloat16),  # o_sc : per-head attention outputs (bf16)
            pltpu.VMEM((TQ, D), jnp.float32),   # y_sc : attention-block residual
            pltpu.VMEM((TQ, D), jnp.bfloat16),  # h_sc : modulated rmsnorm (MLP matmul input)
            pltpu.VMEM((TQ, D), jnp.float32),   # acc_sc : MLP f32 accumulator
        ],
        compiler_params=pltpu.CompilerParams(
            dimension_semantics=("parallel", "parallel", "arbitrary"),
            vmem_limit_bytes=budget,
        ),
    )(seq_q, k_all, v_all, ada3, mask3,
      params["norm1_w"], params["norm2_w"],
      params["wq"], params["wo"], w_in_f, params["w_out"])
    return out


# ---------------------------------- parameters ----------------------------------------
def init_params(key, D, num_heads, mlp_ratio=4.0):
    Hd = int(D * mlp_ratio)
    ks = jax.random.split(key, 8)
    s = 0.1
    bf = jnp.bfloat16
    return {
        "num_heads": num_heads,
        "norm1_w": jnp.ones((1, D), jnp.float32),
        "normk_w": jnp.ones((1, D), jnp.float32),
        "norm2_w": jnp.ones((1, D), jnp.float32),
        "b_ada": jax.random.normal(ks[1], (1, 6 * D), jnp.float32) * s,
        "w_ada": (jax.random.normal(ks[0], (3 * D, 6 * D), jnp.float32) * s).astype(bf),
        "wq": (jax.random.normal(ks[2], (D, D), jnp.float32) * s).astype(bf),
        "wk": (jax.random.normal(ks[3], (D, D), jnp.float32) * s).astype(bf),
        "wv": (jax.random.normal(ks[4], (D, D), jnp.float32) * s).astype(bf),
        "wo": (jax.random.normal(ks[5], (D, D), jnp.float32) * s).astype(bf),
        "w_in": (jax.random.normal(ks[6], (D, 2 * Hd), jnp.float32) * s).astype(bf),
        "w_out": (jax.random.normal(ks[7], (Hd, D), jnp.float32) * s).astype(bf),
    }


# ------------------------------- pure-JAX reference ------------------------------------
def ref_forward(params, seq_q, seq_k, ctxt, mask_k):
    f32 = lambda a: a.astype(jnp.float32)
    D = seq_q.shape[-1]
    H = int(params["num_heads"])
    dh = D // H

    def rms(x, w):
        return x * lax.rsqrt(jnp.mean(x * x, -1, keepdims=True) + EPS) * w

    seq_q = f32(seq_q); seq_k = f32(seq_k); ctxt = f32(ctxt)
    ada = _silu(ctxt) @ f32(params["w_ada"]) + f32(params["b_ada"])
    sh_msa, sc_msa, g_msa, sh_mlp, sc_mlp, g_mlp = jnp.split(ada, 6, axis=-1)

    xq = rms(seq_q, params["norm1_w"]) * (1 + sc_msa[:, None, :]) + sh_msa[:, None, :]
    xk = rms(seq_k, params["normk_w"])
    q = xq @ f32(params["wq"]); k = xk @ f32(params["wk"]); v = xk @ f32(params["wv"])
    B, Lq, _ = q.shape; Lk = k.shape[1]
    qh = q.reshape(B, Lq, H, dh); kh = k.reshape(B, Lk, H, dh); vh = v.reshape(B, Lk, H, dh)
    s = jnp.einsum("bqhd,bkhd->bhqk", qh, kh) / jnp.sqrt(dh)
    s = jnp.where(mask_k[:, None, None, :], s, NEG_INF)
    p = jax.nn.softmax(s, axis=-1)
    o = jnp.einsum("bhqk,bkhd->bqhd", p, vh).reshape(B, Lq, D) @ f32(params["wo"])
    seq_q = seq_q + g_msa[:, None, :] * o

    h = rms(seq_q, params["norm2_w"]) * (1 + sc_mlp[:, None, :]) + sh_mlp[:, None, :]
    u = h @ f32(params["w_in"])
    Hd = params["w_out"].shape[0]
    g = _silu(u[..., :Hd]) * u[..., Hd:]
    return seq_q + g_mlp[:, None, :] * (g @ f32(params["w_out"]))


if __name__ == "__main__":
    B, Lq, Lk, D, H = 2, 8, 16, 32, 4

    key = jax.random.PRNGKey(0)
    kp, kq, kk, kc = jax.random.split(key, 4)
    params = init_params(kp, D, H, mlp_ratio=4.0)

    seq_q = jax.random.normal(kq, (B, Lq, D), jnp.float32).astype(jnp.bfloat16)
    seq_k = jax.random.normal(kk, (B, Lk, D), jnp.float32).astype(jnp.bfloat16)
    ctxt = jax.random.normal(kc, (B, 3 * D), jnp.float32)
    lengths = jnp.array([Lk, Lk - 5])
    mask_k = jnp.arange(Lk)[None, :] < lengths[:, None]          # (B, Lk) bool

    out = ca_layer_forward(params, seq_q, seq_k, ctxt, mask_k)
    out = jax.block_until_ready(out)

    ref = ref_forward(params, seq_q, seq_k, ctxt, mask_k)
    out32 = out.astype(jnp.float32)
    rel_err = float(jnp.max(jnp.abs(out32 - ref)) / (jnp.max(jnp.abs(ref)) + 1e-6))
    assert rel_err < 3e-2, f"relative error too large: {rel_err}"

    print("KERNEL_OK")
</pallas_src>

<mosaic_0001>
module attributes {stable_mosaic.version = 11 : i64} {
  func.func @_k(%arg0: i32, %arg1: memref<8x128xf32, #tpu.memory_space<vmem>>, %arg2: memref<8x128xf32, #tpu.memory_space<vmem>>) attributes {dimension_semantics = [#tpu.dimension_semantics<arbitrary>], iteration_bounds = array<i64: 2>, scalar_prefetch = 0 : i64, scratch_operands = 0 : i64, tpu.core_type = #tpu.core_type<tc>, window_params = [{pipeline_mode = #tpu.pipeline_mode<synchronous>, transform_indices = @transform_0, window_bounds = array<i64: 8, 128>}, {transform_indices = @transform_1, window_bounds = array<i64: 8, 128>}]} {
    %c0 = arith.constant 0 : index
    %c0_0 = arith.constant 0 : index
    %0 = vector.load %arg1[%c0, %c0_0] : memref<8x128xf32, #tpu.memory_space<vmem>>, vector<8x128xf32>
    %cst = arith.constant 1.000000e+00 : f32
    %1 = vector.broadcast %cst : f32 to vector<8x128xf32>
    %2 = arith.addf %0, %1 : vector<8x128xf32>
    %c0_1 = arith.constant 0 : index
    %c0_2 = arith.constant 0 : index
    %3 = vector.load %arg2[%c0_1, %c0_2] : memref<8x128xf32, #tpu.memory_space<vmem>>, vector<8x128xf32>
    tpu.vector_store %arg2[%c0_1, %c0_2], %2 {strides = array<i32>} : memref<8x128xf32, #tpu.memory_space<vmem>>, vector<8x128xf32>,
    return
  }
  func.func @transform_0(%arg0: i32) -> (i32, i32) {
    %c0_i32 = arith.constant 0 : i32
    %c0_i32_0 = arith.constant 0 : i32
    return %arg0, %c0_i32 : i32, i32
  }
  func.func @transform_1(%arg0: i32) -> (i32, i32) {
    %c0_i32 = arith.constant 0 : i32
    %c0_i32_0 = arith.constant 0 : i32
    return %arg0, %c0_i32 : i32, i32
  }
}

module attributes {stable_mosaic.version = 11 : i64} {
  func.func @kv_proj_kernel(%arg0: i32, %arg1: i32, %arg2: memref<1x16x32xbf16, #tpu.memory_space<vmem>>, %arg3: memref<1x32xf32, #tpu.memory_space<vmem>>, %arg4: memref<32x64xbf16, #tpu.memory_space<vmem>>, %arg5: memref<1x16x32xbf16, #tpu.memory_space<vmem>>, %arg6: memref<1x16x32xbf16, #tpu.memory_space<vmem>>) attributes {dimension_semantics = [#tpu.dimension_semantics<parallel>, #tpu.dimension_semantics<parallel>], iteration_bounds = array<i64: 2, 1>, scalar_prefetch = 0 : i64, scratch_operands = 0 : i64, tpu.core_type = #tpu.core_type<tc>, window_params = [{transform_indices = @transform_0, window_bounds = array<i64: 1, 16, 32>}, {pipeline_mode = #tpu.pipeline_mode<synchronous>, transform_indices = @transform_1, window_bounds = array<i64: 1, 32>}, {pipeline_mode = #tpu.pipeline_mode<synchronous>, transform_indices = @transform_2, window_bounds = array<i64: 32, 64>}, {transform_indices = @transform_3, window_bounds = array<i64: 1, 16, 32>}, {transform_indices = @transform_4, window_bounds = array<i64: 1, 16, 32>}]} {
    %c0 = arith.constant 0 : index
    %c0_0 = arith.constant 0 : index
    %c0_1 = arith.constant 0 : index
    %0 = vector.load %arg2[%c0, %c0_0, %c0_1] : memref<1x16x32xbf16, #tpu.memory_space<vmem>>, vector<1x16x32xbf16>
    %1 = vector.shape_cast %0 : vector<1x16x32xbf16> to vector<16x32xbf16>
    %2 = arith.extf %1 : vector<16x32xbf16> to vector<16x32xf32>
    %c0_2 = arith.constant 0 : index
    %c0_3 = arith.constant 0 : index
    %3 = vector.load %arg3[%c0_2, %c0_3] : memref<1x32xf32, #tpu.memory_space<vmem>>, vector<1x32xf32>
    %4 = arith.mulf %2, %2 : vector<16x32xf32>
    %cst = arith.constant dense<0.000000e+00> : vector<16xf32>
    %5 = vector.multi_reduction <add>, %4, %cst [1] : vector<16x32xf32> to vector<16xf32>
    %6 = vector.shape_cast %5 : vector<16xf32> to vector<16x1xf32>
    %cst_4 = arith.constant 3.200000e+01 : f32
    %7 = vector.broadcast %cst_4 : f32 to vector<16x1xf32>
    %8 = arith.divf %6, %7 : vector<16x1xf32>
    %cst_5 = arith.constant 9.99999997E-7 : f32
    %9 = vector.broadcast %cst_5 : f32 to vector<16x1xf32>
    %10 = arith.addf %8, %9 : vector<16x1xf32>
    %11 = math.rsqrt %10 : vector<16x1xf32>
    %12 = vector.broadcast %11 : vector<16x1xf32> to vector<16x32xf32>
    %13 = arith.mulf %2, %12 : vector<16x32xf32>
    %14 = vector.broadcast %3 : vector<1x32xf32> to vector<16x32xf32>
    %15 = arith.mulf %13, %14 : vector<16x32xf32>
    %16 = arith.truncf %15 : vector<16x32xf32> to vector<16x32xbf16>
    %c0_6 = arith.constant 0 : index
    %c0_7 = arith.constant 0 : index
    %17 = vector.load %arg4[%c0_6, %c0_7] : memref<32x64xbf16, #tpu.memory_space<vmem>>, vector<32x64xbf16>
    %cst_8 = arith.constant dense<0.000000e+00> : vector<16x64xf32>
    %18 = tpu.matmul %16, %17, %cst_8 {dimension_numbers = #tpu.dot_dimension_numbers<[1], [0], [0], [1], [0, 0, 1, 1], [], []>} : vector<16x32xbf16>, vector<32x64xbf16>, vector<16x64xf32> -> vector<16x64xf32>
    %19 = vector.extract_strided_slice %18 {offsets = [0, 0], sizes = [16, 32], strides = [1, 1]} : vector<16x64xf32> to vector<16x32xf32>
    %20 = arith.truncf %19 : vector<16x32xf32> to vector<16x32xbf16>
    %c0_9 = arith.constant 0 : index
    %c0_10 = arith.constant 0 : index
    %c0_11 = arith.constant 0 : index
    %21 = vector.load %arg5[%c0_9, %c0_10, %c0_11] : memref<1x16x32xbf16, #tpu.memory_space<vmem>>, vector<1x16x32xbf16>
    %22 = vector.shape_cast %21 : vector<1x16x32xbf16> to vector<16x32xbf16>
    %23 = vector.shape_cast %20 : vector<16x32xbf16> to vector<1x16x32xbf16>
    tpu.vector_store %arg5[%c0_9, %c0_10, %c0_11], %23 {strides = array<i32>} : memref<1x16x32xbf16, #tpu.memory_space<vmem>>, vector<1x16x32xbf16>,
    %24 = vector.extract_strided_slice %18 {offsets = [0, 32], sizes = [16, 32], strides = [1, 1]} : vector<16x64xf32> to vector<16x32xf32>
    %25 = arith.truncf %24 : vector<16x32xf32> to vector<16x32xbf16>
    %c0_12 = arith.constant 0 : index
    %c0_13 = arith.constant 0 : index
    %c0_14 = arith.constant 0 : index
    %26 = vector.load %arg6[%c0_12, %c0_13, %c0_14] : memref<1x16x32xbf16, #tpu.memory_space<vmem>>, vector<1x16x32xbf16>
    %27 = vector.shape_cast %26 : vector<1x16x32xbf16> to vector<16x32xbf16>
    %28 = vector.shape_cast %25 : vector<16x32xbf16> to vector<1x16x32xbf16>
    tpu.vector_store %arg6[%c0_12, %c0_13, %c0_14], %28 {strides = array<i32>} : memref<1x16x32xbf16, #tpu.memory_space<vmem>>, vector<1x16x32xbf16>,
    return
  }
  func.func @transform_0(%arg0: i32, %arg1: i32) -> (i32, i32, i32) {
    %c0_i32 = arith.constant 0 : i32
    %c0_i32_0 = arith.constant 0 : i32
    return %arg0, %arg1, %c0_i32 : i32, i32, i32
  }
  func.func @transform_1(%arg0: i32, %arg1: i32) -> (i32, i32) {
    %c0_i32 = arith.constant 0 : i32
    %c0_i32_0 = arith.constant 0 : i32
    %c0_i32_1 = arith.constant 0 : i32
    return %c0_i32, %c0_i32_0 : i32, i32
  }
  func.func @transform_2(%arg0: i32, %arg1: i32) -> (i32, i32) {
    %c0_i32 = arith.constant 0 : i32
    %c0_i32_0 = arith.constant 0 : i32
    %c0_i32_1 = arith.constant 0 : i32
    return %c0_i32, %c0_i32_0 : i32, i32
  }
  func.func @transform_3(%arg0: i32, %arg1: i32) -> (i32, i32, i32) {
    %c0_i32 = arith.constant 0 : i32
    %c0_i32_0 = arith.constant 0 : i32
    return %arg0, %arg1, %c0_i32 : i32, i32, i32
  }
  func.func @transform_4(%arg0: i32, %arg1: i32) -> (i32, i32, i32) {
    %c0_i32 = arith.constant 0 : i32
    %c0_i32_0 = arith.constant 0 : i32
    return %arg0, %arg1, %c0_i32 : i32, i32, i32
  }
}

</mosaic_0001>

<llo_original>
// kernel: tpu_custom_call.1
$region0: #{tpu_custom_call.1}
  #allocation0 [shape = 'u32[]', space=smem, size = 0x4, offset = 0x4, fixed_abs, tag = 'smem constant byte address 0x4 - core index']
  #allocation1 [shape = 'u32[144,128]{1,0:T(1,128)}', space=vmem, size = 0x12000, scoped, tag = 'internal scratch']
  %s0 = inlined_call_operand.hbm [shape: f32[16,128], index: 0, kind: input, shape index: {}]
  %s1 = inlined_call_operand.hbm [shape: f32[16,128], index: 1, kind: output, shape index: {}]
  %s2 = sld [smem:[#allocation0]]
  $region41: #{tpu_custom_call.1} parent=0
    _
  %s4 = ssub.s32 1, %s2
  %s5 = scalar_select 0, %s4, %s2
  $region1: #{tpu_custom_call.1} parent=0
    #allocation2 [shape = 'u8[4096]{0}', space=vmem, size = 0x1000, scoped, tag = 'input window, operand 0, single buffered']
    #allocation3 [shape = 's32[2]{0}', space=sflag, size = 0x8, scoped, tag = 'scoped memory for tpu_custom_call.1']
    #allocation4 [shape = 's32[2]{0}', space=sflag, size = 0x8, scoped, tag = 'scoped memory for tpu_custom_call.1']
    #allocation5 [shape = 'u8[8192]{0}', space=vmem, size = 0x2000, scoped, tag = 'output window, operand 0']
    %6 = vsyncpa [#allocation3], 0
    %7 = vsyncpa [#allocation4], 0
    %s8 = scalar_lea.sflag [#allocation4], 1
    %9 = vsyncpa %s8, 0
    loop: start=0, step=1, limit=4
    $region2: #{tpu_custom_call.1} parent=1 // loop_pre_header
      _
    $region3: #{tpu_custom_call.1} parent=1 // loop_header
      %s11 = sphi 0, %s15
      %p12 = scmp.ge.s32.totalorder %s11, 4
      %s21 = sphi 0, %s23
      %s24 = sphi 0, %s21
      %s25 = sphi 0, %s24
      %s41 = sphi 0, %s25
      %s47 = sphi 0, %s49
      %s50 = sphi 0, %s47
      %s51 = sphi 0, %s50
      %s67 = sphi 0, %s51
    $region4: #{tpu_custom_call.1} parent=1 // loop_header_branch
      %14 = sbr.rel (%p12) target = $region8
    $region5: #{tpu_custom_call.1} parent=1 // loop_body
      %s16 = ssub.s32 %s11, 1
      %s17 = ssub.s32 %s11, 2
      %s18 = sadd.s32 %s11, 1
      %s19 = ssub.s32 %s11, %s18
      %p20 = scmp.eq.s32.totalorder %s19, 0
      %s22 = sadd.s32 %s21, 1
      %s23 = scalar_select %p20, %s21, %s22
      %p26 = pneg %p20
      %p27 = scmp.eq.s32.totalorder %s11, 1
      %p28 = por %p26, %p27
      %p29 = scmp.ne.s32.totalorder %s21, %s24
      %p30 = scmp.eq.s32.totalorder %s11, 0
      %p31 = por %p29, %p30
      %p32 = scmp.ne.s32.totalorder %s21, %s24
      %p33 = scmp.eq.s32.totalorder %s16, 1
      %p34 = por %p32, %p33
      %p35 = scmp.ne.s32.totalorder %s24, %s25
      %p36 = scmp.eq.s32.totalorder %s16, 0
      %p37 = por %p35, %p36
      %p38 = scmp.ne.s32.totalorder %s24, %s25
      %p39 = scmp.eq.s32.totalorder %s17, 1
      %p40 = por %p38, %p39
      %p42 = scmp.ne.s32.totalorder %s25, %s41
      %p43 = scmp.eq.s32.totalorder %s17, 0
      %p44 = por %p42, %p43
      %s45 = ssub.s32 %s11, %s18
      %p46 = scmp.eq.s32.totalorder %s45, 0
      %s48 = sadd.s32 %s47, 1
      %s49 = scalar_select %p46, %s47, %s48
      %p52 = pneg %p46
      %p53 = scmp.eq.s32.totalorder %s11, 1
      %p54 = por %p52, %p53
      %p55 = scmp.ne.s32.totalorder %s47, %s50
      %p56 = scmp.eq.s32.totalorder %s11, 0
      %p57 = por %p55, %p56
      %p58 = scmp.ne.s32.totalorder %s47, %s50
      %p59 = scmp.eq.s32.totalorder %s16, 1
      %p60 = por %p58, %p59
      %p61 = scmp.ne.s32.totalorder %s50, %s51
      %p62 = scmp.eq.s32.totalorder %s16, 0
      %p63 = por %p61, %p62
      %p64 = scmp.ne.s32.totalorder %s50, %s51
      %p65 = scmp.eq.s32.totalorder %s17, 1
      %p66 = por %p64, %p65
      %p68 = scmp.ne.s32.totalorder %s51, %s67
      %p69 = scmp.eq.s32.totalorder %s17, 0
      %p70 = por %p68, %p69
      %p71 = scmp.le.s32.totalorder 1, %s11
      %p72 = scmp.lt.s32.totalorder %s11, 3
      %p73 = pnand %p71, %p72
      %p74 = pneg %p73
      // Predicated region
      $region9: #{tpu_custom_call.1} parent=5 // pred_check
        _
      $region10: #{tpu_custom_call.1} parent=5 // pred_check_branch
        %76 = sbr.rel (%p73) target = $region12
      $region11: #{tpu_custom_call.1} parent=5 // pred_region
        %s77 = ssub.s32 %s11, 1
        // Predicated region
        $region13: #{tpu_custom_call.1} parent=11 // pred_check
          %p78 = pneg %p37
        $region14: #{tpu_custom_call.1} parent=11 // pred_check_branch
          %80 = sbr.rel (%p78) target = $region16
        $region15: #{tpu_custom_call.1} parent=11 // pred_region
          %s82 = ssub.s32 128, 128
          %83 = vsyncadd [#allocation3], %s82
          %s84 = smul.addr %s16, 128
          %s85 = scalar_lea.hbm %s0, %s84
          %s87 = sshll.u32 [#allocation2], 4
          %s88 = int_to_ptr.vmem [resolvable:$true] %s87
          %90 = dma.hbm_to_vmem [thread:$0]  %s85, 128, %s88, [#allocation3]
        $region16: #{tpu_custom_call.1} parent=11 // pred_fallthru
          _
      $region12: #{tpu_custom_call.1} parent=5 // pred_fallthru
        _
      %p91 = scmp.lt.s32.totalorder %s11, 2
      // Predicated region
      $region17: #{tpu_custom_call.1} parent=5 // pred_check
        %p92 = pneg %p91
      $region18: #{tpu_custom_call.1} parent=5 // pred_check_branch
        %94 = sbr.rel (%p92) target = $region20
      $region19: #{tpu_custom_call.1} parent=5 // pred_region
        _
      $region20: #{tpu_custom_call.1} parent=5 // pred_fallthru
        _
      %p95 = scmp.le.s32.totalorder 1, %s11
      %p96 = scmp.lt.s32.totalorder %s11, 3
      %p97 = pnand %p95, %p96
      %p98 = pneg %p97
      // Predicated region
      $region21: #{tpu_custom_call.1} parent=5 // pred_check
        _
      $region22: #{tpu_custom_call.1} parent=5 // pred_check_branch
        %100 = sbr.rel (%p97) target = $region24
      $region23: #{tpu_custom_call.1} parent=5 // pred_region
        %s101 = ssub.s32 %s11, 1
        // Predicated region
        $region25: #{tpu_custom_call.1} parent=23 // pred_check
          %p102 = pneg %p37
        $region26: #{tpu_custom_call.1} parent=23 // pred_check_branch
          %104 = sbr.rel (%p102) target = $region28
        $region27: #{tpu_custom_call.1} parent=23 // pred_region
          %105 = dma.done [#allocation3], 128
        $region28: #{tpu_custom_call.1} parent=23 // pred_fallthru
          _
        %p106 = pneg %p37
        %p107 = pneg %p34
        %p108 = pneg %p63
        %p109 = pneg %p60
        %s110 = sand.u32 %s50, 1
        %s111 = scalar_lea.sflag [#allocation4], %s110
        %s112 = sand.u32 %s50, 1
        %s113 = smul.addr %s112, 8
        %s114 = scalar_lea.vmem [#allocation5], %s113
        %v115 = vld [vmem:[#allocation2] sm:$0xff]
        %v116 = vadd.f32 %v115, 1.0
        %117 = vst [vmem:[%s114] sm:$0xff] %v116
        %s118 = sand.u32 %s50, 1
        %s119 = scalar_lea.sflag [#allocation4], %s118
        %s120 = sand.u32 %s50, 1
        %s121 = smul.addr %s120, 8
        %s122 = scalar_lea.vmem [#allocation5], %s121
        // Predicated region
        $region29: #{tpu_custom_call.1} parent=23 // pred_check
          %p123 = pneg %p60
        $region30: #{tpu_custom_call.1} parent=23 // pred_check_branch
          %125 = sbr.rel (%p123) target = $region32
        $region31: #{tpu_custom_call.1} parent=23 // pred_region
          %s127 = ssub.s32 128, 128
          %128 = vsyncadd %s119, %s127
          %s129 = smul.addr %s16, 128
          %s130 = scalar_lea.hbm %s1, %s129
          %s132 = sshll.u32 %s122, 4
          %s133 = int_to_ptr.vmem [resolvable:$true] %s132
          %135 = dma.vmem_to_hbm [thread:$0]  %s133, 128, %s130, %s119
        $region32: #{tpu_custom_call.1} parent=23 // pred_fallthru
          _
      $region24: #{tpu_custom_call.1} parent=5 // pred_fallthru
        _
      %p136 = scmp.le.s32.totalorder 2, %s11
      // Predicated region
      $region33: #{tpu_custom_call.1} parent=5 // pred_check
        %p137 = pneg %p136
      $region34: #{tpu_custom_call.1} parent=5 // pred_check_branch
        %139 = sbr.rel (%p137) target = $region36
      $region35: #{tpu_custom_call.1} parent=5 // pred_region
        %s140 = ssub.s32 %s11, 2
        // Predicated region
        $region37: #{tpu_custom_call.1} parent=35 // pred_check
          %p141 = pneg %p66
        $region38: #{tpu_custom_call.1} parent=35 // pred_check_branch
          %143 = sbr.rel (%p141) target = $region40
        $region39: #{tpu_custom_call.1} parent=35 // pred_region
          %s144 = sand.u32 %s51, 1
          %s145 = scalar_lea.sflag [#allocation4], %s144
          %s146 = sand.u32 %s51, 1
          %s147 = smul.addr %s146, 8
          %s148 = scalar_lea.vmem [#allocation5], %s147
          %149 = dma.done %s145, 128
        $region40: #{tpu_custom_call.1} parent=35 // pred_fallthru
          _
      $region36: #{tpu_custom_call.1} parent=5 // pred_fallthru
        _
    $region6: #{tpu_custom_call.1} parent=1 // loop_footer
      %s15 = sadd.s32 1, %s11
    $region7: #{tpu_custom_call.1} parent=1 // loop_footer_branch
      %10 = sbr.rel target = $region3
    $region8: #{tpu_custom_call.1} parent=1 // loop_exit
      _
    %150 = vsyncpa [#allocation3], 1
    %s151 = scalar_lea.sflag [#allocation3], 1
    %152 = vsyncpa %s151, 1
    %153 = vsyncpa [#allocation4], 1
    %s154 = scalar_lea.sflag [#allocation4], 1
    %155 = vsyncpa %s154, 1

// kernel: tpu_custom_call.1
$region0: #{tpu_custom_call.1}
  #allocation0 [shape = 'u32[]', space=smem, size = 0x4, offset = 0x4, fixed_abs, tag = 'smem constant byte address 0x4 - core index']
  #allocation1 [shape = 'u32[144,128]{1,0:T(1,128)}', space=vmem, size = 0x12000, scoped, tag = 'internal scratch']
  %s0 = inlined_call_operand.hbm [shape: bf16[2,16,32], index: 0, kind: input, shape index: {}]
  %s1 = inlined_call_operand.vmem [shape: f32[1,32], index: 1, kind: input, shape index: {}]
  %s2 = inlined_call_operand.hbm [shape: bf16[32,64], index: 2, kind: input, shape index: {}]
  %s3 = inlined_call_operand.hbm [shape: bf16[2,16,32], index: 3, kind: output, shape index: {0}]
  %s4 = inlined_call_operand.hbm [shape: bf16[2,16,32], index: 4, kind: output, shape index: {1}]
  %5 = xla_tuple %s3, %s4
  %s6 = sld [smem:[#allocation0]]
  $region61: #{tpu_custom_call.1} parent=0
    _
  %s8 = ssub.s32 1, %s6
  %s9 = scalar_select 0, %s8, %s6
  $region1: #{tpu_custom_call.1} parent=0
    #allocation2 [shape = 'u8[8192]{0}', space=vmem, size = 0x2000, scoped, tag = 'input window, operand 0']
    #allocation3 [shape = 's32[2]{0}', space=sflag, size = 0x8, scoped, tag = 'scoped memory for tpu_custom_call.1']
    #allocation4 [shape = 's32[2]{0}', space=sflag, size = 0x8, scoped, tag = 'scoped memory for tpu_custom_call.1']
    #allocation5 [shape = 'u8[8192]{0}', space=vmem, size = 0x2000, scoped, tag = 'input window, operand 2, single buffered']
    #allocation6 [shape = 's32[1]{0}', space=sflag, size = 0x4, scoped, tag = 'scoped memory for tpu_custom_call.1']
    #allocation7 [shape = 'u8[8192]{0}', space=vmem, size = 0x2000, scoped, tag = 'output window, operand 0']
    #allocation8 [shape = 'u8[8192]{0}', space=vmem, size = 0x2000, scoped, tag = 'output window, operand 1']
    #allocation9 [shape = 's32[2]{0}', space=sflag, size = 0x8, scoped, tag = 'scoped memory for tpu_custom_call.1']
    %10 = vsyncpa [#allocation3], 0
    %s11 = scalar_lea.sflag [#allocation3], 1
    %12 = vsyncpa %s11, 0
    %13 = vsyncpa [#allocation6], 0
    %14 = vsyncpa [#allocation4], 0
    %s15 = scalar_lea.sflag [#allocation4], 1
    %16 = vsyncpa %s15, 0
    %17 = vsyncpa [#allocation9], 0
    %s18 = scalar_lea.sflag [#allocation9], 1
    %19 = vsyncpa %s18, 0
    loop: start=0, step=1, limit=4
    $region2: #{tpu_custom_call.1} parent=1 // loop_pre_header
      _
    $region3: #{tpu_custom_call.1} parent=1 // loop_header
      %s21 = sphi 0, %s25
      %p22 = scmp.ge.s32.totalorder %s21, 4
      %s28 = sphi 0, %s40
      %s29 = sphi 0, %s36
      %s30 = sphi 0, %s28
      %s31 = sphi 0, %s29
      %s32 = sphi 0, %s30
      %s33 = sphi 0, %s31
      %s45 = sphi 0, %s47
      %s48 = sphi 0, %s45
      %s49 = sphi 0, %s48
      %s65 = sphi 0, %s49
      %s69 = sphi 0, %s69
      %s71 = sphi 0, %s69
      %s72 = sphi 0, %s71
      %s86 = sphi 0, %s72
      %s90 = sphi 0, %s90
      %s92 = sphi 0, %s90
      %s93 = sphi 0, %s92
      %s107 = sphi 0, %s93
      %s115 = sphi 0, %s117
      %s118 = sphi 0, %s115
      %s119 = sphi 0, %s118
      %s135 = sphi 0, %s119
      %s143 = sphi 0, %s145
      %s146 = sphi 0, %s143
      %s147 = sphi 0, %s146
      %s163 = sphi 0, %s147
    $region4: #{tpu_custom_call.1} parent=1 // loop_header_branch
      %24 = sbr.rel (%p22) target = $region8
    $region5: #{tpu_custom_call.1} parent=1 // loop_body
      %s26 = ssub.s32 %s21, 1
      %s27 = ssub.s32 %s21, 2
      %s34 = sadd.s32 1, %s29
      %p35 = scmp.ge.s32.totalorder %s34, 1
      %s36 = scalar_select %p35, 0, %s34
      %s37 = sadd.s32 1, %s28
      %s38 = scalar_select %p35, %s37, %s28
      %p39 = scmp.ge.s32.totalorder %s38, 2
      %s40 = scalar_select %p39, 0, %s38
      %s41 = ssub.s32 %s28, %s40
      %s42 = ssub.s32 %s29, %s36
      %s43 = sor.u32 %s41, %s42
      %p44 = scmp.eq.s32.totalorder %s43, 0
      %s46 = sadd.s32 %s45, 1
      %s47 = scalar_select %p44, %s45, %s46
      %p50 = pneg %p44
      %p51 = scmp.eq.s32.totalorder %s21, 1
      %p52 = por %p50, %p51
      %p53 = scmp.ne.s32.totalorder %s45, %s48
      %p54 = scmp.eq.s32.totalorder %s21, 0
      %p55 = por %p53, %p54
      %p56 = scmp.ne.s32.totalorder %s45, %s48
      %p57 = scmp.eq.s32.totalorder %s26, 1
      %p58 = por %p56, %p57
      %p59 = scmp.ne.s32.totalorder %s48, %s49
      %p60 = scmp.eq.s32.totalorder %s26, 0
      %p61 = por %p59, %p60
      %p62 = scmp.ne.s32.totalorder %s48, %s49
      %p63 = scmp.eq.s32.totalorder %s27, 1
      %p64 = por %p62, %p63
      %p66 = scmp.ne.s32.totalorder %s49, %s65
      %p67 = scmp.eq.s32.totalorder %s27, 0
      %p68 = por %p66, %p67
      %s70 = sadd.s32 %s69, 1
      %p73 = scmp.eq.s32.totalorder %s21, 1
      %p74 = scmp.ne.s32.totalorder %s69, %s71
      %p75 = scmp.eq.s32.totalorder %s21, 0
      %p76 = por %p74, %p75
      %p77 = scmp.ne.s32.totalorder %s69, %s71
      %p78 = scmp.eq.s32.totalorder %s26, 1
      %p79 = por %p77, %p78
      %p80 = scmp.ne.s32.totalorder %s71, %s72
      %p81 = scmp.eq.s32.totalorder %s26, 0
      %p82 = por %p80, %p81
      %p83 = scmp.ne.s32.totalorder %s71, %s72
      %p84 = scmp.eq.s32.totalorder %s27, 1
      %p85 = por %p83, %p84
      %p87 = scmp.ne.s32.totalorder %s72, %s86
      %p88 = scmp.eq.s32.totalorder %s27, 0
      %p89 = por %p87, %p88
      %s91 = sadd.s32 %s90, 1
      %p94 = scmp.eq.s32.totalorder %s21, 1
      %p95 = scmp.ne.s32.totalorder %s90, %s92
      %p96 = scmp.eq.s32.totalorder %s21, 0
      %p97 = por %p95, %p96
      %p98 = scmp.ne.s32.totalorder %s90, %s92
      %p99 = scmp.eq.s32.totalorder %s26, 1
      %p100 = por %p98, %p99
      %p101 = scmp.ne.s32.totalorder %s92, %s93
      %p102 = scmp.eq.s32.totalorder %s26, 0
      %p103 = por %p101, %p102
      %p104 = scmp.ne.s32.totalorder %s92, %s93
      %p105 = scmp.eq.s32.totalorder %s27, 1
      %p106 = por %p104, %p105
      %p108 = scmp.ne.s32.totalorder %s93, %s107
      %p109 = scmp.eq.s32.totalorder %s27, 0
      %p110 = por %p108, %p109
      %s111 = ssub.s32 %s28, %s40
      %s112 = ssub.s32 %s29, %s36
      %s113 = sor.u32 %s111, %s112
      %p114 = scmp.eq.s32.totalorder %s113, 0
      %s116 = sadd.s32 %s115, 1
      %s117 = scalar_select %p114, %s115, %s116
      %p120 = pneg %p114
      %p121 = scmp.eq.s32.totalorder %s21, 1
      %p122 = por %p120, %p121
      %p123 = scmp.ne.s32.totalorder %s115, %s118
      %p124 = scmp.eq.s32.totalorder %s21, 0
      %p125 = por %p123, %p124
      %p126 = scmp.ne.s32.totalorder %s115, %s118
      %p127 = scmp.eq.s32.totalorder %s26, 1
      %p128 = por %p126, %p127
      %p129 = scmp.ne.s32.totalorder %s118, %s119
      %p130 = scmp.eq.s32.totalorder %s26, 0
      %p131 = por %p129, %p130
      %p132 = scmp.ne.s32.totalorder %s118, %s119
      %p133 = scmp.eq.s32.totalorder %s27, 1
      %p134 = por %p132, %p133
      %p136 = scmp.ne.s32.totalorder %s119, %s135
      %p137 = scmp.eq.s32.totalorder %s27, 0
      %p138 = por %p136, %p137
      %s139 = ssub.s32 %s28, %s40
      %s140 = ssub.s32 %s29, %s36
      %s141 = sor.u32 %s139, %s140
      %p142 = scmp.eq.s32.totalorder %s141, 0
      %s144 = sadd.s32 %s143, 1
      %s145 = scalar_select %p142, %s143, %s144
      %p148 = pneg %p142
      %p149 = scmp.eq.s32.totalorder %s21, 1
      %p150 = por %p148, %p149
      %p151 = scmp.ne.s32.totalorder %s143, %s146
      %p152 = scmp.eq.s32.totalorder %s21, 0
      %p153 = por %p151, %p152
      %p154 = scmp.ne.s32.totalorder %s143, %s146
      %p155 = scmp.eq.s32.totalorder %s26, 1
      %p156 = por %p154, %p155
      %p157 = scmp.ne.s32.totalorder %s146, %s147
      %p158 = scmp.eq.s32.totalorder %s26, 0
      %p159 = por %p157, %p158
      %p160 = scmp.ne.s32.totalorder %s146, %s147
      %p161 = scmp.eq.s32.totalorder %s27, 1
      %p162 = por %p160, %p161
      %p164 = scmp.ne.s32.totalorder %s147, %s163
      %p165 = scmp.eq.s32.totalorder %s27, 0
      %p166 = por %p164, %p165
      %p167 = scmp.le.s32.totalorder 1, %s21
      %p168 = scmp.lt.s32.totalorder %s21, 3
      %p169 = pnand %p167, %p168
      %p170 = pneg %p169
      // Predicated region
      $region9: #{tpu_custom_call.1} parent=5 // pred_check
        _
      $region10: #{tpu_custom_call.1} parent=5 // pred_check_branch
        %172 = sbr.rel (%p169) target = $region12
      $region11: #{tpu_custom_call.1} parent=5 // pred_region
        %s173 = ssub.s32 %s21, 1
        // Predicated region
        $region13: #{tpu_custom_call.1} parent=11 // pred_check
          %p174 = pneg %p82
        $region14: #{tpu_custom_call.1} parent=11 // pred_check_branch
          %176 = sbr.rel (%p174) target = $region16
        $region15: #{tpu_custom_call.1} parent=11 // pred_region
          _
        $region16: #{tpu_custom_call.1} parent=11 // pred_fallthru
          _
        // Predicated region
        $region17: #{tpu_custom_call.1} parent=11 // pred_check
          %p177 = pneg %p103
        $region18: #{tpu_custom_call.1} parent=11 // pred_check_branch
          %179 = sbr.rel (%p177) target = $region20
        $region19: #{tpu_custom_call.1} parent=11 // pred_region
          %s181 = ssub.s32 256, 256
          %182 = vsyncadd [#allocation6], %s181
          %s183 = sshll.u32 [#allocation5], 4
          %s184 = int_to_ptr.vmem [resolvable:$true] %s183
          %189 = dma.hbm_to_vmem [thread:$0]  %s2, 256, %s184, [#allocation6], 64, 64, 4
        $region20: #{tpu_custom_call.1} parent=11 // pred_fallthru
          _
      $region12: #{tpu_custom_call.1} parent=5 // pred_fallthru
        _
      %p190 = scmp.lt.s32.totalorder %s21, 2
      // Predicated region
      $region21: #{tpu_custom_call.1} parent=5 // pred_check
        %p191 = pneg %p190
      $region22: #{tpu_custom_call.1} parent=5 // pred_check_branch
        %193 = sbr.rel (%p191) target = $region24
      $region23: #{tpu_custom_call.1} parent=5 // pred_region
        // Predicated region
        $region25: #{tpu_custom_call.1} parent=23 // pred_check
          %p194 = pneg %p55
        $region26: #{tpu_custom_call.1} parent=23 // pred_check_branch
          %196 = sbr.rel (%p194) target = $region28
        $region27: #{tpu_custom_call.1} parent=23 // pred_region
          %s197 = sand.u32 %s45, 1
          %s198 = scalar_lea.sflag [#allocation3], %s197
          %s199 = sand.u32 %s45, 1
          %s200 = smul.addr %s199, 8
          %s201 = scalar_lea.vmem [#allocation2], %s200
          %s202 = smul.u32 2, %s29
          %s204 = ssub.s32 128, 128
          %205 = vsyncadd %s198, %s204
          %s206 = smul.addr %s28, 2
          %s207 = sadd.s32 %s202, %s206
          %s208 = smul.addr %s207, 64
          %s209 = scalar_lea.hbm %s0, %s208
          %s210 = sshll.u32 %s201, 4
          %s211 = int_to_ptr.vmem [resolvable:$true] %s210
          %216 = dma.hbm_to_vmem [thread:$0]  %s209, 128, %s211, %s198, 64, 64, 4
        $region28: #{tpu_custom_call.1} parent=23 // pred_fallthru
          _
      $region24: #{tpu_custom_call.1} parent=5 // pred_fallthru
        _
      %p217 = scmp.le.s32.totalorder 1, %s21
      %p218 = scmp.lt.s32.totalorder %s21, 3
      %p219 = pnand %p217, %p218
      %p220 = pneg %p219
      // Predicated region
      $region29: #{tpu_custom_call.1} parent=5 // pred_check
        _
      $region30: #{tpu_custom_call.1} parent=5 // pred_check_branch
        %222 = sbr.rel (%p219) target = $region32
      $region31: #{tpu_custom_call.1} parent=5 // pred_region
        %s223 = ssub.s32 %s21, 1
        %s224 = sand.u32 %s48, 1
        %s225 = scalar_lea.sflag [#allocation3], %s224
        %s226 = sand.u32 %s48, 1
        %s227 = smul.addr %s226, 8
        %s228 = scalar_lea.vmem [#allocation2], %s227
        // Predicated region
        $region33: #{tpu_custom_call.1} parent=31 // pred_check
          %p229 = pneg %p61
        $region34: #{tpu_custom_call.1} parent=31 // pred_check_branch
          %231 = sbr.rel (%p229) target = $region36
        $region35: #{tpu_custom_call.1} parent=31 // pred_region
          %232 = dma.done %s225, 128
        $region36: #{tpu_custom_call.1} parent=31 // pred_fallthru
          _
        // Predicated region
        $region37: #{tpu_custom_call.1} parent=31 // pred_check
          %p233 = pneg %p103
        $region38: #{tpu_custom_call.1} parent=31 // pred_check_branch
          %235 = sbr.rel (%p233) target = $region40
        $region39: #{tpu_custom_call.1} parent=31 // pred_region
          %236 = dma.done [#allocation6], 256
        $region40: #{tpu_custom_call.1} parent=31 // pred_fallthru
          _
        %s237 = sand.u32 %s48, 1
        %s238 = scalar_lea.sflag [#allocation3], %s237
        %s239 = sand.u32 %s48, 1
        %s240 = smul.addr %s239, 8
        %s241 = scalar_lea.vmem [#allocation2], %s240
        %p242 = pneg %p61
        %p243 = pneg %p58
        %p244 = pneg %p82
        %p245 = pneg %p79
        %p246 = pneg %p103
        %p247 = pneg %p100
        %p248 = pneg %p131
        %p249 = pneg %p128
        %s250 = sand.u32 %s118, 1
        %s251 = scalar_lea.sflag [#allocation4], %s250
        %s252 = sand.u32 %s118, 1
        %s253 = smul.addr %s252, 8
        %s254 = scalar_lea.vmem [#allocation7], %s253
        %p255 = pneg %p159
        %p256 = pneg %p156
        %s257 = sand.u32 %s146, 1
        %s258 = scalar_lea.sflag [#allocation9], %s257
        %s259 = sand.u32 %s146, 1
        %s260 = smul.addr %s259, 8
        %s261 = scalar_lea.vmem [#allocation8], %s260
        %s262 = smul.u32 2, %s31
        %s263 = smul.u32 2, %s31
        %s264 = smul.u32 2, %s31
        %v266 = vld [vmem:[%s228] sm:$0xf]
        %v267 = vld [vmem:[%s228 + $0x4] sm:$0xf]
        %v268 = vunpack.c.l.bf16 %v266
        %v269 = vunpack.c.l.bf16 %v267
        %v270 = vld [vmem:[%s1] sm:$0x1]
        %v271 = vmul.f32 %v268, %v268
        %v272 = vmul.f32 %v269, %v269
        %vm273 = vcmask 261120
        %v274 = vsel %vm273, %v271, 0.0
        %275 = vadd.xlane.f32.xlu0 %v274
        %v276 = vpop.xlane.xlu0 %275
        %v277 = vsel %vm273, %v272, 0.0
        %278 = vadd.xlane.f32.xlu0 %v277
        %v279 = vpop.xlane.xlu0 %278
        %v280 = vrcp.pop 32.0
        %v281 = vmul.f32 %v276, %v280
        %v282 = vmul.f32 %v279, %v280
        %v283 = vadd.f32 %v281, 1e-06
        %v284 = vadd.f32 %v282, 1e-06
        %v285 = vrsqrt.pop %v283
        %v286 = vrsqrt.pop %v284
        %v287 = vmul.f32 %v268, %v285
        %v288 = vmul.f32 %v269, %v286
        %v290 = vlaneseq
        %v291 = vshrl.u32 %v290, 7
        %v292 = vsub.s32 0, %v291
        %v293 = vrot.slane %v270, %v292
        %v295 = vmul.f32 %v287, %v293
        %v296 = vmul.f32 %v288, %v293
        %v297 = vpack.c.bf16 %v296, %v295
        %v298 = vld [vmem:[#allocation5] sm:$0xf]
        %v299 = vld [vmem:[#allocation5 + $0x4] sm:$0xf]
        %v300 = vld [vmem:[#allocation5 + $0x8] sm:$0xf]
        %v301 = vld [vmem:[#allocation5 + $0xc] sm:$0xf]
        %v306 = vunpack.c.l.b16 %v298
        %v307 = vunpack.c.l.b16 %v299
        %v308 = vunpack.c.l.b16 %v300
        %v309 = vunpack.c.l.b16 %v301
        %v310 = vpack.c.b16 %v307, %v306
        %v311 = vpack.c.b16 %v309, %v308
        %v315 = vsel %vm273, %v297, 0
        %317 = vmatprep.subr.bf16.mxu0 0
        %318 = vmatpush1.bf16.msra.mxu0 %v310
        %319 = vmatprep.subr.bf16.mxu0 0
        %320 = vmatpush1.bf16.msra.mxu0 %v311
        %321 = vmatprep.subr.bf16.mxu0 0
        %322 = vmatpush1.bf16.msra.mxu0 0
        %323 = vmatprep.subr.bf16.mxu0 0
        %324 = vmatpush1.bf16.msra.mxu0 0
        %325 = vmatprep.subr.bf16.mxu0 0
        %326 = vmatpush1.bf16.msra.mxu0 0
        %327 = vmatprep.subr.bf16.mxu0 0
        %328 = vmatpush1.bf16.msra.mxu0 0
        %329 = vmatprep.subr.bf16.mxu0 0
        %330 = vmatpush1.bf16.msra.mxu0 0
        %331 = vmatprep.subr.bf16.mxu0 0
        %332 = vmatpush1.bf16.msra.mxu0 0
        %333 = vmatprep.subr.bf16.mxu0 0
        %334 = vmatpush1.bf16.msra.mxu0 0
        %335 = vmatprep.subr.bf16.mxu0 0
        %336 = vmatpush1.bf16.msra.mxu0 0
        %337 = vmatprep.subr.bf16.mxu0 0
        %338 = vmatpush1.bf16.msra.mxu0 0
        %339 = vmatprep.subr.bf16.mxu0 0
        %340 = vmatpush1.bf16.msra.mxu0 0
        %341 = vmatprep.subr.bf16.mxu0 0
        %342 = vmatpush1.bf16.msra.mxu0 0
        %343 = vmatprep.subr.bf16.mxu0 0
        %344 = vmatpush1.bf16.msra.mxu0 0
        %345 = vmatprep.subr.bf16.mxu0 0
        %346 = vmatpush1.bf16.msra.mxu0 0
        %347 = vmatprep.subr.bf16.mxu0 0
        %348 = vmatpush1.bf16.msra.mxu0 0
        %349 = vmatprep.mubr.bf16.mxu0 0
        %350 = vmatmul.mubr.bf16.gmra.mrb[0].mxu0 %v315
        %v351 = vpop.f32.mrb[0].mxu0
        %v352 = vadd.f32 0.0, %v351
        %v353 = vpop.f32.mrb[0].mxu0
        %v354 = vpop.f32.mrb[0].mxu0
        %v355 = vadd.f32 0.0, %v354
        %v356 = vpop.f32.mrb[0].mxu0
        %357 = vdwg.mxu0
        %v358 = vpack.c.bf16 %v355, %v352
        %v360 = vunpack.c.l.b16 %v358
        %v361 = vunpack.c.h.b16 %v358
        %v362 = vpack.c.b16 %v360, %v360
        %v363 = vpack.c.b16 %v361, %v361
        %vm366 = vcmask 257024
        %367 = vst.msk [vmem:[%s254] sm:$0xf] %vm366, %v362
        %368 = vst.msk [vmem:[%s254 + $0x4] sm:$0xf] %vm366, %v363
        %369 = vrot.lane.b32.xlu0 %v362, 96
        %v370 = vpop.permute.xlu0 %369
        %371 = vrot.lane.b32.xlu0 %v363, 96
        %v372 = vpop.permute.xlu0 %371
        %375 = vst.msk [vmem:[%s261] sm:$0xf] %vm366, %v370
        %376 = vst.msk [vmem:[%s261 + $0x4] sm:$0xf] %vm366, %v372
        %s377 = sand.u32 %s118, 1
        %s378 = scalar_lea.sflag [#allocation4], %s377
        %s379 = sand.u32 %s118, 1
        %s380 = smul.addr %s379, 8
        %s381 = scalar_lea.vmem [#allocation7], %s380
        %s382 = sand.u32 %s146, 1
        %s383 = scalar_lea.sflag [#allocation9], %s382
        %s384 = sand.u32 %s146, 1
        %s385 = smul.addr %s384, 8
        %s386 = scalar_lea.vmem [#allocation8], %s385
        // Predicated region
        $region41: #{tpu_custom_call.1} parent=31 // pred_check
          %p387 = pneg %p128
        $region42: #{tpu_custom_call.1} parent=31 // pred_check_branch
          %389 = sbr.rel (%p387) target = $region44
        $region43: #{tpu_custom_call.1} parent=31 // pred_region
          %s390 = smul.u32 2, %s31
          %s392 = ssub.s32 128, 128
          %393 = vsyncadd %s378, %s392
          %s394 = smul.addr %s30, 2
          %s395 = sadd.s32 %s390, %s394
          %s396 = smul.addr %s395, 64
          %s397 = scalar_lea.hbm %s3, %s396
          %s398 = sshll.u32 %s381, 4
          %s399 = int_to_ptr.vmem [resolvable:$true] %s398
          %404 = dma.vmem_to_hbm [thread:$0]  %s399, 128, %s397, %s378, 64, 64, 4
        $region44: #{tpu_custom_call.1} parent=31 // pred_fallthru
          _
        // Predicated region
        $region45: #{tpu_custom_call.1} parent=31 // pred_check
          %p405 = pneg %p156
        $region46: #{tpu_custom_call.1} parent=31 // pred_check_branch
          %407 = sbr.rel (%p405) target = $region48
        $region47: #{tpu_custom_call.1} parent=31 // pred_region
          %s408 = smul.u32 2, %s31
          %s410 = ssub.s32 128, 128
          %411 = vsyncadd %s383, %s410
          %s412 = smul.addr %s30, 2
          %s413 = sadd.s32 %s408, %s412
          %s414 = smul.addr %s413, 64
          %s415 = scalar_lea.hbm %s4, %s414
          %s416 = sshll.u32 %s386, 4
          %s417 = int_to_ptr.vmem [resolvable:$true] %s416
          %422 = dma.vmem_to_hbm [thread:$0]  %s417, 128, %s415, %s383, 64, 64, 4
        $region48: #{tpu_custom_call.1} parent=31 // pred_fallthru
          _
      $region32: #{tpu_custom_call.1} parent=5 // pred_fallthru
        _
      %p423 = scmp.le.s32.totalorder 2, %s21
      // Predicated region
      $region49: #{tpu_custom_call.1} parent=5 // pred_check
        %p424 = pneg %p423
      $region50: #{tpu_custom_call.1} parent=5 // pred_check_branch
        %426 = sbr.rel (%p424) target = $region52
      $region51: #{tpu_custom_call.1} parent=5 // pred_region
        %s427 = ssub.s32 %s21, 2
        // Predicated region
        $region53: #{tpu_custom_call.1} parent=51 // pred_check
          %p428 = pneg %p134
        $region54: #{tpu_custom_call.1} parent=51 // pred_check_branch
          %430 = sbr.rel (%p428) target = $region56
        $region55: #{tpu_custom_call.1} parent=51 // pred_region
          %s431 = sand.u32 %s119, 1
          %s432 = scalar_lea.sflag [#allocation4], %s431
          %s433 = sand.u32 %s119, 1
          %s434 = smul.addr %s433, 8
          %s435 = scalar_lea.vmem [#allocation7], %s434
          %436 = dma.done %s432, 128
        $region56: #{tpu_custom_call.1} parent=51 // pred_fallthru
          _
        // Predicated region
        $region57: #{tpu_custom_call.1} parent=51 // pred_check
          %p437 = pneg %p162
        $region58: #{tpu_custom_call.1} parent=51 // pred_check_branch
          %439 = sbr.rel (%p437) target = $region60
        $region59: #{tpu_custom_call.1} parent=51 // pred_region
          %s440 = sand.u32 %s147, 1
          %s441 = scalar_lea.sflag [#allocation9], %s440
          %s442 = sand.u32 %s147, 1
          %s443 = smul.addr %s442, 8
          %s444 = scalar_lea.vmem [#allocation8], %s443
          %445 = dma.done %s441, 128
        $region60: #{tpu_custom_call.1} parent=51 // pred_fallthru
          _
      $region52: #{tpu_custom_call.1} parent=5 // pred_fallthru
        _
    $region6: #{tpu_custom_call.1} parent=1 // loop_footer
      %s25 = sadd.s32 1, %s21
    $region7: #{tpu_custom_call.1} parent=1 // loop_footer_branch
      %20 = sbr.rel target = $region3
    $region8: #{tpu_custom_call.1} parent=1 // loop_exit
      _
    %446 = vsyncpa [#allocation3], 1
    %s447 = scalar_lea.sflag [#allocation3], 1
    %448 = vsyncpa %s447, 1
    %449 = vsyncpa [#allocation6], 1
    %450 = vsyncpa [#allocation4], 1
    %s451 = scalar_lea.sflag [#allocation4], 1
    %452 = vsyncpa %s451, 1
    %453 = vsyncpa [#allocation9], 1
    %s454 = scalar_lea.sflag [#allocation9], 1
    %455 = vsyncpa %s454, 1

</llo_original>
